<compile_context>
chip_gen: v6e
topology: v6e:2x2x1
jax: 0.10.0
libtpu: 0.0.40
codegen_flags: <defaults>
</compile_context>

<pallas_src>
import jax
import jax.numpy as jnp
import numpy as np
from jax.experimental import pallas as pl
from jax.experimental.pallas import tpu as pltpu


def _round_up(x, m):
    return ((x + m - 1) // m) * m


def mlp_kernel(x_ref, w1_ref, b1_ref, w2_ref, b2_ref, w3_ref, b3_ref, o_ref):
    # Transposed, lane-dense layout: batch is the last (128-lane) axis.
    xT = x_ref[...]                                              # (D_in, TB)
    # fc1 + ReLU
    h1 = jnp.dot(w1_ref[...], xT, preferred_element_type=jnp.float32) + b1_ref[...]
    h1 = jnp.maximum(h1, 0.0)                                    # (8, TB)
    # fc2 + ReLU
    h2 = jnp.dot(w2_ref[...], h1, preferred_element_type=jnp.float32) + b2_ref[...]
    h2 = jnp.maximum(h2, 0.0)                                    # (8, TB)
    # fc3 (no activation)
    o_ref[...] = (jnp.dot(w3_ref[...], h2, preferred_element_type=jnp.float32)
                  + b3_ref[...]).astype(o_ref.dtype)             # (D_out, TB)


def net_forward(x, params, *, block_b=512):
    """x: (B, input_size) float32 -> (B, output_size) float32."""
    w1, b1, w2, b2, w3, b3 = (params["w1"], params["b1"], params["w2"],
                              params["b2"], params["w3"], params["b3"])
    B, d_in = x.shape
    d_out = w3.shape[0]                    # weights are (out, in), PyTorch layout

    # Batch tile on the lane axis: a multiple of 128, capped at block_b.
    tb = min(block_b, _round_up(max(B, 1), 128))
    b_pad = _round_up(B, tb)
    grid = (pl.cdiv(b_pad, tb),)

    # Lane-dense transposed input (D_in, B_pad); padded columns are zeros and
    # are sliced away after the call, so they never affect real outputs.
    xT = jnp.zeros((d_in, b_pad), x.dtype).at[:, :B].set(x.T)

    # Weights/biases: full blocks, constant index map -> fetched once, resident.
    resident = lambda a: pl.BlockSpec(a.shape, lambda i: (0, 0))

    outT = pl.pallas_call(
        mlp_kernel,
        out_shape=jax.ShapeDtypeStruct((d_out, b_pad), jnp.float32),
        grid=grid,
        in_specs=[
            pl.BlockSpec((d_in, tb), lambda i: (0, i)),   # streamed x tile
            resident(w1), resident(b1),
            resident(w2), resident(b2),
            resident(w3), resident(b3),
        ],
        out_specs=pl.BlockSpec((d_out, tb), lambda i: (0, i)),
        compiler_params=pltpu.CompilerParams(
            dimension_semantics=("parallel",),            # 2 TCs on v7x
            vmem_limit_bytes=32 << 20,
        ),
    )(xT, w1, b1, w2, b2, w3, b3)

    return outT[:, :B].T


def init_params(key, input_size, output_size):
    """PyTorch Linear default init: U(-1/sqrt(fan_in), 1/sqrt(fan_in)).
    Stored PyTorch-style: W (out, in), b (out, 1)."""
    def linear(key, fan_in, fan_out):
        kw, kb = jax.random.split(key)
        bound = 1.0 / np.sqrt(fan_in)
        w = jax.random.uniform(kw, (fan_out, fan_in), jnp.float32, -bound, bound)
        b = jax.random.uniform(kb, (fan_out, 1), jnp.float32, -bound, bound)
        return w, b

    k1, k2, k3 = jax.random.split(key, 3)
    w1, b1 = linear(k1, input_size, 8)
    w2, b2 = linear(k2, 8, 8)
    w3, b3 = linear(k3, 8, output_size)
    return dict(w1=w1, b1=b1, w2=w2, b2=b2, w3=w3, b3=b3)


def net_forward_ref(x, p):
    h1 = jnp.maximum(x @ p["w1"].T + p["b1"].T, 0.0)
    h2 = jnp.maximum(h1 @ p["w2"].T + p["b2"].T, 0.0)
    return h2 @ p["w3"].T + p["b3"].T


if __name__ == "__main__":
    input_size = 4
    output_size = 2

    key = jax.random.PRNGKey(0)
    kx, kp, kx2 = jax.random.split(key, 3)
    params = init_params(kp, input_size, output_size)

    # Small batch (matches the module's intended use).
    batch = 8
    x = jax.random.normal(kx, (batch, input_size), jnp.float32)
    out = jax.block_until_ready(net_forward(x, params))
    ref = net_forward_ref(x, params)
    np.testing.assert_allclose(np.asarray(out), np.asarray(ref), rtol=1e-5, atol=1e-5)

    # Multi-tile + tail-padding path (grid > 1, B not a multiple of the tile).
    batch2 = 300
    x2 = jax.random.normal(kx2, (batch2, input_size), jnp.float32)
    out2 = jax.block_until_ready(net_forward(x2, params, block_b=128))
    ref2 = net_forward_ref(x2, params)
    np.testing.assert_allclose(np.asarray(out2), np.asarray(ref2), rtol=1e-5, atol=1e-5)

    print("KERNEL_OK")
</pallas_src>

<mosaic_0001>
module attributes {stable_mosaic.version = 11 : i64} {
  func.func @mlp_kernel(%arg0: i32, %arg1: memref<4x128xf32, #tpu.memory_space<vmem>>, %arg2: memref<8x4xf32, #tpu.memory_space<vmem>>, %arg3: memref<8x1xf32, #tpu.memory_space<vmem>>, %arg4: memref<8x8xf32, #tpu.memory_space<vmem>>, %arg5: memref<8x1xf32, #tpu.memory_space<vmem>>, %arg6: memref<2x8xf32, #tpu.memory_space<vmem>>, %arg7: memref<2x1xf32, #tpu.memory_space<vmem>>, %arg8: memref<2x128xf32, #tpu.memory_space<vmem>>) attributes {dimension_semantics = [#tpu.dimension_semantics<parallel>], iteration_bounds = array<i64: 1>, scalar_prefetch = 0 : i64, scratch_operands = 0 : i64, tpu.core_type = #tpu.core_type<tc>, window_params = [{transform_indices = @transform_0, window_bounds = array<i64: 4, 128>}, {pipeline_mode = #tpu.pipeline_mode<synchronous>, transform_indices = @transform_1, window_bounds = array<i64: 8, 4>}, {pipeline_mode = #tpu.pipeline_mode<synchronous>, transform_indices = @transform_2, window_bounds = array<i64: 8, 1>}, {pipeline_mode = #tpu.pipeline_mode<synchronous>, transform_indices = @transform_3, window_bounds = array<i64: 8, 8>}, {pipeline_mode = #tpu.pipeline_mode<synchronous>, transform_indices = @transform_4, window_bounds = array<i64: 8, 1>}, {pipeline_mode = #tpu.pipeline_mode<synchronous>, transform_indices = @transform_5, window_bounds = array<i64: 2, 8>}, {pipeline_mode = #tpu.pipeline_mode<synchronous>, transform_indices = @transform_6, window_bounds = array<i64: 2, 1>}, {transform_indices = @transform_7, window_bounds = array<i64: 2, 128>}]} {
    %c0 = arith.constant 0 : index
    %c0_0 = arith.constant 0 : index
    %0 = vector.load %arg1[%c0, %c0_0] : memref<4x128xf32, #tpu.memory_space<vmem>>, vector<4x128xf32>
    %c0_1 = arith.constant 0 : index
    %c0_2 = arith.constant 0 : index
    %1 = vector.load %arg2[%c0_1, %c0_2] : memref<8x4xf32, #tpu.memory_space<vmem>>, vector<8x4xf32>
    %cst = arith.constant dense<0.000000e+00> : vector<8x128xf32>
    %2 = tpu.matmul %1, %0, %cst {dimension_numbers = #tpu.dot_dimension_numbers<[1], [0], [0], [1], [0, 0, 1, 1], [], []>} : vector<8x4xf32>, vector<4x128xf32>, vector<8x128xf32> -> vector<8x128xf32>
    %c0_3 = arith.constant 0 : index
    %c0_4 = arith.constant 0 : index
    %3 = vector.load %arg3[%c0_3, %c0_4] : memref<8x1xf32, #tpu.memory_space<vmem>>, vector<8x1xf32>
    %4 = vector.broadcast %3 : vector<8x1xf32> to vector<8x128xf32>
    %5 = arith.addf %2, %4 : vector<8x128xf32>
    %cst_5 = arith.constant 0.000000e+00 : f32
    %6 = vector.broadcast %cst_5 : f32 to vector<8x128xf32>
    %7 = arith.maximumf %5, %6 : vector<8x128xf32>
    %c0_6 = arith.constant 0 : index
    %c0_7 = arith.constant 0 : index
    %8 = vector.load %arg4[%c0_6, %c0_7] : memref<8x8xf32, #tpu.memory_space<vmem>>, vector<8x8xf32>
    %cst_8 = arith.constant dense<0.000000e+00> : vector<8x128xf32>
    %9 = tpu.matmul %8, %7, %cst_8 {dimension_numbers = #tpu.dot_dimension_numbers<[1], [0], [0], [1], [0, 0, 1, 1], [], []>} : vector<8x8xf32>, vector<8x128xf32>, vector<8x128xf32> -> vector<8x128xf32>
    %c0_9 = arith.constant 0 : index
    %c0_10 = arith.constant 0 : index
    %10 = vector.load %arg5[%c0_9, %c0_10] : memref<8x1xf32, #tpu.memory_space<vmem>>, vector<8x1xf32>
    %11 = vector.broadcast %10 : vector<8x1xf32> to vector<8x128xf32>
    %12 = arith.addf %9, %11 : vector<8x128xf32>
    %cst_11 = arith.constant 0.000000e+00 : f32
    %13 = vector.broadcast %cst_11 : f32 to vector<8x128xf32>
    %14 = arith.maximumf %12, %13 : vector<8x128xf32>
    %c0_12 = arith.constant 0 : index
    %c0_13 = arith.constant 0 : index
    %15 = vector.load %arg6[%c0_12, %c0_13] : memref<2x8xf32, #tpu.memory_space<vmem>>, vector<2x8xf32>
    %cst_14 = arith.constant dense<0.000000e+00> : vector<2x128xf32>
    %16 = tpu.matmul %15, %14, %cst_14 {dimension_numbers = #tpu.dot_dimension_numbers<[1], [0], [0], [1], [0, 0, 1, 1], [], []>} : vector<2x8xf32>, vector<8x128xf32>, vector<2x128xf32> -> vector<2x128xf32>
    %c0_15 = arith.constant 0 : index
    %c0_16 = arith.constant 0 : index
    %17 = vector.load %arg7[%c0_15, %c0_16] : memref<2x1xf32, #tpu.memory_space<vmem>>, vector<2x1xf32>
    %18 = vector.broadcast %17 : vector<2x1xf32> to vector<2x128xf32>
    %19 = arith.addf %16, %18 : vector<2x128xf32>
    %c0_17 = arith.constant 0 : index
    %c0_18 = arith.constant 0 : index
    %20 = vector.load %arg8[%c0_17, %c0_18] : memref<2x128xf32, #tpu.memory_space<vmem>>, vector<2x128xf32>
    tpu.vector_store %arg8[%c0_17, %c0_18], %19 {strides = array<i32>} : memref<2x128xf32, #tpu.memory_space<vmem>>, vector<2x128xf32>,
    return
  }
  func.func @transform_0(%arg0: i32) -> (i32, i32) {
    %c0_i32 = arith.constant 0 : i32
    %c0_i32_0 = arith.constant 0 : i32
    return %c0_i32, %arg0 : i32, i32
  }
  func.func @transform_1(%arg0: i32) -> (i32, i32) {
    %c0_i32 = arith.constant 0 : i32
    %c0_i32_0 = arith.constant 0 : i32
    %c0_i32_1 = arith.constant 0 : i32
    return %c0_i32, %c0_i32_0 : i32, i32
  }
  func.func @transform_2(%arg0: i32) -> (i32, i32) {
    %c0_i32 = arith.constant 0 : i32
    %c0_i32_0 = arith.constant 0 : i32
    %c0_i32_1 = arith.constant 0 : i32
    return %c0_i32, %c0_i32_0 : i32, i32
  }
  func.func @transform_3(%arg0: i32) -> (i32, i32) {
    %c0_i32 = arith.constant 0 : i32
    %c0_i32_0 = arith.constant 0 : i32
    %c0_i32_1 = arith.constant 0 : i32
    return %c0_i32, %c0_i32_0 : i32, i32
  }
  func.func @transform_4(%arg0: i32) -> (i32, i32) {
    %c0_i32 = arith.constant 0 : i32
    %c0_i32_0 = arith.constant 0 : i32
    %c0_i32_1 = arith.constant 0 : i32
    return %c0_i32, %c0_i32_0 : i32, i32
  }
  func.func @transform_5(%arg0: i32) -> (i32, i32) {
    %c0_i32 = arith.constant 0 : i32
    %c0_i32_0 = arith.constant 0 : i32
    %c0_i32_1 = arith.constant 0 : i32
    return %c0_i32, %c0_i32_0 : i32, i32
  }
  func.func @transform_6(%arg0: i32) -> (i32, i32) {
    %c0_i32 = arith.constant 0 : i32
    %c0_i32_0 = arith.constant 0 : i32
    %c0_i32_1 = arith.constant 0 : i32
    return %c0_i32, %c0_i32_0 : i32, i32
  }
  func.func @transform_7(%arg0: i32) -> (i32, i32) {
    %c0_i32 = arith.constant 0 : i32
    %c0_i32_0 = arith.constant 0 : i32
    return %c0_i32, %arg0 : i32, i32
  }
}

</mosaic_0001>

<llo_original>
// kernel: tpu_custom_call.1
$region0: #{tpu_custom_call.1}
  #allocation0 [shape = 'u32[]', space=smem, size = 0x4, offset = 0x4, fixed_abs, tag = 'smem constant byte address 0x4 - core index']
  #allocation1 [shape = 'u32[144,128]{1,0:T(1,128)}', space=vmem, size = 0x12000, scoped, tag = 'internal scratch']
  %s0 = inlined_call_operand.vmem [shape: f32[4,128], index: 0, kind: input, shape index: {}]
  %s1 = inlined_call_operand.vmem [shape: f32[8,4], index: 1, kind: input, shape index: {}]
  %s2 = inlined_call_operand.vmem [shape: f32[8,1], index: 2, kind: input, shape index: {}]
  %s3 = inlined_call_operand.vmem [shape: f32[8,8], index: 3, kind: input, shape index: {}]
  %s4 = inlined_call_operand.vmem [shape: f32[8,1], index: 4, kind: input, shape index: {}]
  %s5 = inlined_call_operand.vmem [shape: f32[2,8], index: 5, kind: input, shape index: {}]
  %s6 = inlined_call_operand.vmem [shape: f32[2,1], index: 6, kind: input, shape index: {}]
  %s7 = inlined_call_operand.hbm [shape: f32[2,128], index: 7, kind: output, shape index: {}]
  %s8 = sld [smem:[#allocation0]]
  $region38: #{tpu_custom_call.1} parent=0
    _
  %s10 = ssub.s32 1, %s8
  %s11 = scalar_select 0, %s10, %s8
  $region1: #{tpu_custom_call.1} parent=0
    #allocation2 [shape = 'u8[1024]{0}', space=vmem, size = 0x400, scoped, tag = 'output window, operand 0, single buffered']
    #allocation3 [shape = 's32[1]{0}', space=sflag, size = 0x4, scoped, tag = 'scoped memory for tpu_custom_call.1']
    %12 = vsyncpa [#allocation3], 0
    // Predicated region
    $region2: #{tpu_custom_call.1} parent=1 // pred_check
      _
    $region3: #{tpu_custom_call.1} parent=1 // pred_check_branch
      %14 = sbr.rel (0) target = $region5
    $region4: #{tpu_custom_call.1} parent=1 // pred_region
      _
    $region5: #{tpu_custom_call.1} parent=1 // pred_fallthru
      _
    // Predicated region
    $region6: #{tpu_custom_call.1} parent=1 // pred_check
      _
    $region7: #{tpu_custom_call.1} parent=1 // pred_check_branch
      %16 = sbr.rel (0) target = $region9
    $region8: #{tpu_custom_call.1} parent=1 // pred_region
      _
    $region9: #{tpu_custom_call.1} parent=1 // pred_fallthru
      _
    // Predicated region
    $region10: #{tpu_custom_call.1} parent=1 // pred_check
      _
    $region11: #{tpu_custom_call.1} parent=1 // pred_check_branch
      %18 = sbr.rel (0) target = $region13
    $region12: #{tpu_custom_call.1} parent=1 // pred_region
      _
    $region13: #{tpu_custom_call.1} parent=1 // pred_fallthru
      _
    // Predicated region
    $region14: #{tpu_custom_call.1} parent=1 // pred_check
      _
    $region15: #{tpu_custom_call.1} parent=1 // pred_check_branch
      %20 = sbr.rel (0) target = $region17
    $region16: #{tpu_custom_call.1} parent=1 // pred_region
      _
    $region17: #{tpu_custom_call.1} parent=1 // pred_fallthru
      _
    // Predicated region
    $region18: #{tpu_custom_call.1} parent=1 // pred_check
      _
    $region19: #{tpu_custom_call.1} parent=1 // pred_check_branch
      %22 = sbr.rel (0) target = $region21
    $region20: #{tpu_custom_call.1} parent=1 // pred_region
      _
    $region21: #{tpu_custom_call.1} parent=1 // pred_fallthru
      _
    // Predicated region
    $region22: #{tpu_custom_call.1} parent=1 // pred_check
      _
    $region23: #{tpu_custom_call.1} parent=1 // pred_check_branch
      %24 = sbr.rel (0) target = $region25
    $region24: #{tpu_custom_call.1} parent=1 // pred_region
      _
    $region25: #{tpu_custom_call.1} parent=1 // pred_fallthru
      _
    // Predicated region
    $region26: #{tpu_custom_call.1} parent=1 // pred_check
      _
    $region27: #{tpu_custom_call.1} parent=1 // pred_check_branch
      %26 = sbr.rel (0) target = $region29
    $region28: #{tpu_custom_call.1} parent=1 // pred_region
      _
    $region29: #{tpu_custom_call.1} parent=1 // pred_fallthru
      _
    %v27 = vld [vmem:[%s0] sm:$0xf]
    %v28 = vld [vmem:[%s1] sm:$0xff]
    %v29 = vld [vmem:[%s2] sm:$0xff]
    %31 = vset.pattern.permute.xlu0 0
    %32 = vperm.xlu0 %31, %v29
    %v33 = vpop.permute.xlu0 %32
    %vm35 = vcmask 31744
    %v37 = vsel %vm35, %v28, 0
    %vm39 = vcmask 1043456
    %v41 = vsel %vm39, %v27, 0
    %43 = vmatprep.subr.mxu0 0.0
    %44 = vmatpush1.msra.mxu0 0.0
    %45 = vmatprep.subr.mxu0 0.0
    %46 = vmatpush1.msra.mxu0 0.0
    %47 = vmatprep.subr.mxu0 0.0
    %48 = vmatpush1.msra.mxu0 0.0
    %49 = vmatprep.subr.mxu0 0.0
    %50 = vmatpush1.msra.mxu0 0.0
    %51 = vmatprep.subr.mxu0 0.0
    %52 = vmatpush1.msra.mxu0 0.0
    %53 = vmatprep.subr.mxu0 0.0
    %54 = vmatpush1.msra.mxu0 0.0
    %55 = vmatprep.subr.mxu0 0.0
    %56 = vmatpush1.msra.mxu0 0.0
    %57 = vmatprep.subr.mxu0 0.0
    %58 = vmatpush1.msra.mxu0 0.0
    %59 = vmatprep.subr.mxu0 0.0
    %60 = vmatpush1.msra.mxu0 0.0
    %61 = vmatprep.subr.mxu0 0.0
    %62 = vmatpush1.msra.mxu0 0.0
    %63 = vmatprep.subr.mxu0 0.0
    %64 = vmatpush1.msra.mxu0 0.0
    %65 = vmatprep.subr.mxu0 0.0
    %66 = vmatpush1.msra.mxu0 0.0
    %67 = vmatprep.subr.mxu0 0.0
    %68 = vmatpush1.msra.mxu0 0.0
    %69 = vmatprep.subr.mxu0 0.0
    %70 = vmatpush1.msra.mxu0 0.0
    %71 = vmatprep.subr.mxu0 0.0
    %72 = vmatpush1.msra.mxu0 0.0
    %73 = vmatprep.subr.mxu0 0.0
    %74 = vmatpush1.msra.mxu0 %v41
    %75 = vmatprep.subr.mxu0 0.0
    %76 = vmatpush2.msra.mxu0 0.0
    %77 = vmatprep.subr.mxu0 0.0
    %78 = vmatpush2.msra.mxu0 0.0
    %79 = vmatprep.subr.mxu0 0.0
    %80 = vmatpush2.msra.mxu0 0.0
    %81 = vmatprep.subr.mxu0 0.0
    %82 = vmatpush2.msra.mxu0 0.0
    %83 = vmatprep.subr.mxu0 0.0
    %84 = vmatpush2.msra.mxu0 0.0
    %85 = vmatprep.subr.mxu0 0.0
    %86 = vmatpush2.msra.mxu0 0.0
    %87 = vmatprep.subr.mxu0 0.0
    %88 = vmatpush2.msra.mxu0 0.0
    %89 = vmatprep.subr.mxu0 0.0
    %90 = vmatpush2.msra.mxu0 0.0
    %91 = vmatprep.subr.mxu0 0.0
    %92 = vmatpush2.msra.mxu0 0.0
    %93 = vmatprep.subr.mxu0 0.0
    %94 = vmatpush2.msra.mxu0 0.0
    %95 = vmatprep.subr.mxu0 0.0
    %96 = vmatpush2.msra.mxu0 0.0
    %97 = vmatprep.subr.mxu0 0.0
    %98 = vmatpush2.msra.mxu0 0.0
    %99 = vmatprep.subr.mxu0 0.0
    %100 = vmatpush2.msra.mxu0 0.0
    %101 = vmatprep.subr.mxu0 0.0
    %102 = vmatpush2.msra.mxu0 0.0
    %103 = vmatprep.subr.mxu0 0.0
    %104 = vmatpush2.msra.mxu0 0.0
    %105 = vmatprep.subr.mxu0 0.0
    %106 = vmatpush2.msra.mxu0 0.0
    %107 = vmatprep.mubr.f32.mxu0 0.0
    %108 = vmatmul.mubr.f32.gmra.mxu0 %v37
    %v109 = vpop.f32.mrf.mxu0
    %v110 = vadd.f32 %v33, %v109
    %v111 = vpop.f32.mrf.mxu0
    %112 = vdwg.mxu0
    %v113 = vmax.f32 %v110, 0.0
    %v114 = vld [vmem:[%s3] sm:$0xff]
    %v115 = vld [vmem:[%s4] sm:$0xff]
    %117 = vset.pattern.permute.xlu0 0
    %118 = vperm.xlu0 %117, %v115
    %v119 = vpop.permute.xlu0 %118
    %vm121 = vcmask 64512
    %v123 = vsel %vm121, %v114, 0
    %125 = vmatprep.subr.mxu0 0.0
    %126 = vmatpush1.msra.mxu0 0.0
    %127 = vmatprep.subr.mxu0 0.0
    %128 = vmatpush1.msra.mxu0 0.0
    %129 = vmatprep.subr.mxu0 0.0
    %130 = vmatpush1.msra.mxu0 0.0
    %131 = vmatprep.subr.mxu0 0.0
    %132 = vmatpush1.msra.mxu0 0.0
    %133 = vmatprep.subr.mxu0 0.0
    %134 = vmatpush1.msra.mxu0 0.0
    %135 = vmatprep.subr.mxu0 0.0
    %136 = vmatpush1.msra.mxu0 0.0
    %137 = vmatprep.subr.mxu0 0.0
    %138 = vmatpush1.msra.mxu0 0.0
    %139 = vmatprep.subr.mxu0 0.0
    %140 = vmatpush1.msra.mxu0 0.0
    %141 = vmatprep.subr.mxu0 0.0
    %142 = vmatpush1.msra.mxu0 0.0
    %143 = vmatprep.subr.mxu0 0.0
    %144 = vmatpush1.msra.mxu0 0.0
    %145 = vmatprep.subr.mxu0 0.0
    %146 = vmatpush1.msra.mxu0 0.0
    %147 = vmatprep.subr.mxu0 0.0
    %148 = vmatpush1.msra.mxu0 0.0
    %149 = vmatprep.subr.mxu0 0.0
    %150 = vmatpush1.msra.mxu0 0.0
    %151 = vmatprep.subr.mxu0 0.0
    %152 = vmatpush1.msra.mxu0 0.0
    %153 = vmatprep.subr.mxu0 0.0
    %154 = vmatpush1.msra.mxu0 0.0
    %155 = vmatprep.subr.mxu0 0.0
    %156 = vmatpush1.msra.mxu0 %v113
    %157 = vmatprep.subr.mxu0 0.0
    %158 = vmatpush2.msra.mxu0 0.0
    %159 = vmatprep.subr.mxu0 0.0
    %160 = vmatpush2.msra.mxu0 0.0
    %161 = vmatprep.subr.mxu0 0.0
    %162 = vmatpush2.msra.mxu0 0.0
    %163 = vmatprep.subr.mxu0 0.0
    %164 = vmatpush2.msra.mxu0 0.0
    %165 = vmatprep.subr.mxu0 0.0
    %166 = vmatpush2.msra.mxu0 0.0
    %167 = vmatprep.subr.mxu0 0.0
    %168 = vmatpush2.msra.mxu0 0.0
    %169 = vmatprep.subr.mxu0 0.0
    %170 = vmatpush2.msra.mxu0 0.0
    %171 = vmatprep.subr.mxu0 0.0
    %172 = vmatpush2.msra.mxu0 0.0
    %173 = vmatprep.subr.mxu0 0.0
    %174 = vmatpush2.msra.mxu0 0.0
    %175 = vmatprep.subr.mxu0 0.0
    %176 = vmatpush2.msra.mxu0 0.0
    %177 = vmatprep.subr.mxu0 0.0
    %178 = vmatpush2.msra.mxu0 0.0
    %179 = vmatprep.subr.mxu0 0.0
    %180 = vmatpush2.msra.mxu0 0.0
    %181 = vmatprep.subr.mxu0 0.0
    %182 = vmatpush2.msra.mxu0 0.0
    %183 = vmatprep.subr.mxu0 0.0
    %184 = vmatpush2.msra.mxu0 0.0
    %185 = vmatprep.subr.mxu0 0.0
    %186 = vmatpush2.msra.mxu0 0.0
    %187 = vmatprep.subr.mxu0 0.0
    %188 = vmatpush2.msra.mxu0 0.0
    %189 = vmatprep.mubr.f32.mxu0 0.0
    %190 = vmatmul.mubr.f32.gmra.mxu0 %v123
    %v191 = vpop.f32.mrf.mxu0
    %v192 = vadd.f32 %v119, %v191
    %v193 = vpop.f32.mrf.mxu0
    %194 = vdwg.mxu0
    %v195 = vmax.f32 %v192, 0.0
    %v196 = vld [vmem:[%s5] sm:$0x3]
    %v197 = vld [vmem:[%s6] sm:$0x3]
    %199 = vset.pattern.permute.xlu0 0
    %200 = vperm.xlu0 %199, %v197
    %v201 = vpop.permute.xlu0 %200
    %v204 = vsel %vm121, %v196, 0
    %206 = vmatprep.subr.mxu0 0.0
    %207 = vmatpush1.msra.mxu0 0.0
    %208 = vmatprep.subr.mxu0 0.0
    %209 = vmatpush1.msra.mxu0 0.0
    %210 = vmatprep.subr.mxu0 0.0
    %211 = vmatpush1.msra.mxu0 0.0
    %212 = vmatprep.subr.mxu0 0.0
    %213 = vmatpush1.msra.mxu0 0.0
    %214 = vmatprep.subr.mxu0 0.0
    %215 = vmatpush1.msra.mxu0 0.0
    %216 = vmatprep.subr.mxu0 0.0
    %217 = vmatpush1.msra.mxu0 0.0
    %218 = vmatprep.subr.mxu0 0.0
    %219 = vmatpush1.msra.mxu0 0.0
    %220 = vmatprep.subr.mxu0 0.0
    %221 = vmatpush1.msra.mxu0 0.0
    %222 = vmatprep.subr.mxu0 0.0
    %223 = vmatpush1.msra.mxu0 0.0
    %224 = vmatprep.subr.mxu0 0.0
    %225 = vmatpush1.msra.mxu0 0.0
    %226 = vmatprep.subr.mxu0 0.0
    %227 = vmatpush1.msra.mxu0 0.0
    %228 = vmatprep.subr.mxu0 0.0
    %229 = vmatpush1.msra.mxu0 0.0
    %230 = vmatprep.subr.mxu0 0.0
    %231 = vmatpush1.msra.mxu0 0.0
    %232 = vmatprep.subr.mxu0 0.0
    %233 = vmatpush1.msra.mxu0 0.0
    %234 = vmatprep.subr.mxu0 0.0
    %235 = vmatpush1.msra.mxu0 0.0
    %236 = vmatprep.subr.mxu0 0.0
    %237 = vmatpush1.msra.mxu0 %v195
    %238 = vmatprep.subr.mxu0 0.0
    %239 = vmatpush2.msra.mxu0 0.0
    %240 = vmatprep.subr.mxu0 0.0
    %241 = vmatpush2.msra.mxu0 0.0
    %242 = vmatprep.subr.mxu0 0.0
    %243 = vmatpush2.msra.mxu0 0.0
    %244 = vmatprep.subr.mxu0 0.0
    %245 = vmatpush2.msra.mxu0 0.0
    %246 = vmatprep.subr.mxu0 0.0
    %247 = vmatpush2.msra.mxu0 0.0
    %248 = vmatprep.subr.mxu0 0.0
    %249 = vmatpush2.msra.mxu0 0.0
    %250 = vmatprep.subr.mxu0 0.0
    %251 = vmatpush2.msra.mxu0 0.0
    %252 = vmatprep.subr.mxu0 0.0
    %253 = vmatpush2.msra.mxu0 0.0
    %254 = vmatprep.subr.mxu0 0.0
    %255 = vmatpush2.msra.mxu0 0.0
    %256 = vmatprep.subr.mxu0 0.0
    %257 = vmatpush2.msra.mxu0 0.0
    %258 = vmatprep.subr.mxu0 0.0
    %259 = vmatpush2.msra.mxu0 0.0
    %260 = vmatprep.subr.mxu0 0.0
    %261 = vmatpush2.msra.mxu0 0.0
    %262 = vmatprep.subr.mxu0 0.0
    %263 = vmatpush2.msra.mxu0 0.0
    %264 = vmatprep.subr.mxu0 0.0
    %265 = vmatpush2.msra.mxu0 0.0
    %266 = vmatprep.subr.mxu0 0.0
    %267 = vmatpush2.msra.mxu0 0.0
    %268 = vmatprep.subr.mxu0 0.0
    %269 = vmatpush2.msra.mxu0 0.0
    %270 = vmatprep.mubr.f32.mxu0 0.0
    %271 = vmatmul.mubr.f32.gmra.mxu0 %v204
    %v272 = vpop.f32.mrf.mxu0
    %v273 = vadd.f32 %v201, %v272
    %v274 = vpop.f32.mrf.mxu0
    %275 = vdwg.mxu0
    %276 = vst [vmem:[#allocation2] sm:$0x3] %v273
    // Predicated region
    $region30: #{tpu_custom_call.1} parent=1 // pred_check
      _
    $region31: #{tpu_custom_call.1} parent=1 // pred_check_branch
      %278 = sbr.rel (0) target = $region33
    $region32: #{tpu_custom_call.1} parent=1 // pred_region
      %s280 = ssub.s32 32, 32
      %281 = vsyncadd [#allocation3], %s280
      %s283 = sshll.u32 [#allocation2], 4
      %s284 = int_to_ptr.vmem [resolvable:$true] %s283
      %286 = dma.vmem_to_hbm [thread:$0]  %s284, 32, %s7, [#allocation3]
    $region33: #{tpu_custom_call.1} parent=1 // pred_fallthru
      _
    // Predicated region
    $region34: #{tpu_custom_call.1} parent=1 // pred_check
      _
    $region35: #{tpu_custom_call.1} parent=1 // pred_check_branch
      %288 = sbr.rel (0) target = $region37
    $region36: #{tpu_custom_call.1} parent=1 // pred_region
      %289 = dma.done [#allocation3], 32
    $region37: #{tpu_custom_call.1} parent=1 // pred_fallthru
      _
    %290 = vsyncpa [#allocation3], 1

</llo_original>
